<compile_context>
chip_gen: v7x
topology: tpu7x:2x2x1
jax: 0.10.0
libtpu: 0.0.40
codegen_flags: <defaults>
</compile_context>

<pallas_src>
import functools

import jax
import jax.numpy as jnp
from jax.experimental import pallas as pl
from jax.experimental.pallas import tpu as pltpu

BN_EPS = 1e-5


# --------------------------------------------------------------------------
# Kernel
# --------------------------------------------------------------------------
def _conv_block_kernel(x_ref, w1_ref, s1_ref, b1_ref, w2_ref, s2_ref, b2_ref,
                       out_ref, *, seg_len):
    # x_ref : (M, Cin) bf16, M = block_n * seg_len rows, organised as block_n
    #         contiguous length-seg_len segments (batch folded into M).
    # w1/w2 : (3*Cin, Cmid) / (3*Cmid, Cout) fused-tap weights (bf16, dense K).
    # s*/b* : (1, C) folded eval-mode BatchNorm scale / bias (f32).
    mblk = x_ref.shape[0]
    cdt = x_ref.dtype                                    # MXU compute dtype (bf16)

    # Halo masks (conv padding=1 within every length-seg_len segment), in-kernel.
    pos = jax.lax.broadcasted_iota(jnp.int32, (mblk, 1), 0) % seg_len
    not_first = pos != 0
    not_last = pos != seg_len - 1

    def shifted(z):
        # z: (M, C) f32 -> (x[l-1], x[l], x[l+1]) with zero rows at segment edges.
        zp = jnp.where(not_first, pltpu.roll(z, shift=1, axis=0), 0.0)
        zn = jnp.where(not_last, pltpu.roll(z, shift=mblk - 1, axis=0), 0.0)
        return zp, z, zn

    def conv3(z, w_ref):
        # z: (M, C) f32,  w_ref: (3*C, Co)  ->  (M, Co) f32.
        c = z.shape[1]
        co = w_ref.shape[1]
        zp, zc, zn = shifted(z)
        if c <= 4:
            # Tiny channel count (conv_1 has Cin=1): 3*C broadcast FMAs on the
            # VPU — the MXU would be >99% zero work here.
            w = w_ref[...].astype(jnp.float32)            # (3*c, co)
            acc = jnp.zeros((mblk, co), jnp.float32)
            for k, zk in enumerate((zp, zc, zn)):
                for j in range(c):
                    acc = acc + zk[:, j:j + 1] * w[k * c + j]
            return acc
        if c < 128:
            # Dense-K fused taps: one MXU matmul with K = 3*C (no lane padding).
            z3 = jnp.concatenate([zp, zc, zn], axis=-1).astype(cdt)
            return jnp.dot(z3, w_ref[...], preferred_element_type=jnp.float32)
        # Large channels: three accumulating matmuls, no (M, 3C) concat.
        acc = jnp.dot(zp.astype(cdt), w_ref[0:c, :],
                      preferred_element_type=jnp.float32)
        acc = acc + jnp.dot(zc.astype(cdt), w_ref[c:2 * c, :],
                            preferred_element_type=jnp.float32)
        acc = acc + jnp.dot(zn.astype(cdt), w_ref[2 * c:3 * c, :],
                            preferred_element_type=jnp.float32)
        return acc

    x = x_ref[...].astype(jnp.float32)                    # exact upcast of bf16
    # conv1 + folded BN + ReLU (f32 on the VPU)
    h = jnp.maximum(conv3(x, w1_ref) * s1_ref[0] + b1_ref[0], 0.0)
    # conv2 + folded BN + ReLU
    y = jnp.maximum(conv3(h, w2_ref) * s2_ref[0] + b2_ref[0], 0.0)
    out_ref[...] = y.astype(out_ref.dtype)                # true-width store


# --------------------------------------------------------------------------
# Block-size heuristic
# --------------------------------------------------------------------------
def _pick_block_n(N, L, cin, cmid, cout, *, vmem_budget=16 << 20, max_rows=4096):
    """Largest legal batch-count per grid step:
       * (8,128) sublane rule on the M dim (or full array),
       * block rows capped at max_rows and a conservative VMEM estimate
         (safe for v7x's 64 MiB physical VMEM),
       * prefer >= 2 grid steps so the parallel grid axis can use both
         TensorCores on v7x."""
    # Rough f32-equivalent live bytes per block row (activations, shifted
    # copies, fused operand, accumulators, double-buffered in/out DMA blocks).
    bytes_per_row = 24 * cin + 20 * cmid + 16 * cout
    divisors = [d for d in range(1, N + 1) if N % d == 0]
    sub_ok = [d for d in divisors if d == N or (d * L) % 8 == 0]
    legal = [d for d in sub_ok
             if d * L <= max_rows and d * L * bytes_per_row <= vmem_budget]
    if not legal:
        return min(sub_ok) if sub_ok else N
    multi = [d for d in legal if N // d >= 2]
    return max(multi) if multi else max(legal)


# --------------------------------------------------------------------------
# Wrapper
# --------------------------------------------------------------------------
def conv_block_pallas(x_ncl, params, *, block_n=None,
                      compute_dtype=jnp.bfloat16):
    """ConvBlock forward.  x_ncl: (N, Cin, L) float32 (PyTorch Conv1d layout)."""
    w1, s1, b1, w2, s2, b2 = params                  # w: (3, Ci, Co), s/b: (1, C)
    N, Cin, L = x_ncl.shape
    Cmid, Cout = w1.shape[2], w2.shape[2]

    # Channels-last, batch folded into the matmul M dimension.  No channel
    # padding in HBM: block last dims equal the true array widths.
    x2 = jnp.transpose(x_ncl, (0, 2, 1)).reshape(N * L, Cin).astype(compute_dtype)

    # Fuse the 3 conv taps densely along K: (3, Ci, Co) -> (3*Ci, Co).
    w1f = w1.reshape(3 * Cin, Cmid).astype(compute_dtype)
    w2f = w2.reshape(3 * Cmid, Cout).astype(compute_dtype)
    s1f = s1.astype(jnp.float32)
    b1f = b1.astype(jnp.float32)
    s2f = s2.astype(jnp.float32)
    b2f = b2.astype(jnp.float32)

    if block_n is None:
        block_n = _pick_block_n(N, L, Cin, Cmid, Cout)
    mblk = block_n * L

    out2 = pl.pallas_call(
        functools.partial(_conv_block_kernel, seg_len=L),
        out_shape=jax.ShapeDtypeStruct((N * L, Cout), jnp.float32),
        grid=(N // block_n,),
        in_specs=[
            pl.BlockSpec((mblk, Cin), lambda i: (i, 0)),         # x (streamed)
            pl.BlockSpec((3 * Cin, Cmid), lambda i: (0, 0)),     # w1 (resident)
            pl.BlockSpec((1, Cmid), lambda i: (0, 0)),           # s1
            pl.BlockSpec((1, Cmid), lambda i: (0, 0)),           # b1
            pl.BlockSpec((3 * Cmid, Cout), lambda i: (0, 0)),    # w2 (resident)
            pl.BlockSpec((1, Cout), lambda i: (0, 0)),           # s2
            pl.BlockSpec((1, Cout), lambda i: (0, 0)),           # b2
        ],
        out_specs=pl.BlockSpec((mblk, Cout), lambda i: (i, 0)),
        compiler_params=pltpu.CompilerParams(
            dimension_semantics=("parallel",),
            vmem_limit_bytes=32 * 1024 * 1024),
    )(x2, w1f, s1f, b1f, w2f, s2f, b2f)

    # Back to PyTorch (N, Cout, L) layout.
    return jnp.transpose(out2.reshape(N, L, Cout), (0, 2, 1))


# --------------------------------------------------------------------------
# Parameters & reference
# --------------------------------------------------------------------------
def init_params(key, in_channels, out_channels, mid_channels=None):
    """Deterministic synthetic parameters (PyTorch shapes, folded eval-mode BN)."""
    if not mid_channels:
        mid_channels = out_channels
    ks = jax.random.split(key, 10)

    # Conv weights: PyTorch (Cout, Cin, k) -> kernel layout (k, Cin, Cout)
    w1_pt = jax.random.normal(ks[0], (mid_channels, in_channels, 3), jnp.float32) * 0.2
    w2_pt = jax.random.normal(ks[1], (out_channels, mid_channels, 3), jnp.float32) * 0.2
    w1 = jnp.transpose(w1_pt, (2, 1, 0))
    w2 = jnp.transpose(w2_pt, (2, 1, 0))

    # BatchNorm1d (eval mode, running stats) folded into scale / bias.
    def bn_fold(kg, kb, km, kv, c):
        gamma = 1.0 + 0.1 * jax.random.normal(kg, (c,), jnp.float32)
        beta = 0.1 * jax.random.normal(kb, (c,), jnp.float32)
        rmean = 0.1 * jax.random.normal(km, (c,), jnp.float32)
        rvar = 1.0 + 0.1 * jax.random.uniform(kv, (c,), jnp.float32)
        scale = gamma / jnp.sqrt(rvar + BN_EPS)
        bias = beta - rmean * scale
        return scale.reshape(1, c), bias.reshape(1, c)

    s1, b1 = bn_fold(ks[2], ks[3], ks[4], ks[5], mid_channels)
    s2, b2 = bn_fold(ks[6], ks[7], ks[8], ks[9], out_channels)
    return (w1, s1, b1, w2, s2, b2)


def conv_block_reference(x_ncl, params, compute_dtype=jnp.bfloat16):
    """Plain-JAX reference with the same bf16-in / f32-accumulate policy."""
    w1, s1, b1, w2, s2, b2 = params
    x = jnp.transpose(x_ncl, (0, 2, 1))                 # (N, L, Cin)
    L = x.shape[1]

    def conv1d(z, w):                                   # w: (3, Ci, Co)
        zc = z.astype(compute_dtype).astype(jnp.float32)
        wc = w.astype(compute_dtype).astype(jnp.float32)
        zp = jnp.pad(zc, ((0, 0), (1, 1), (0, 0)))
        return sum(jnp.einsum("nlc,cd->nld", zp[:, k:k + L], wc[k],
                              preferred_element_type=jnp.float32)
                   for k in range(3))

    h = jnp.maximum(conv1d(x, w1) * s1[None] + b1[None], 0.0)
    y = jnp.maximum(conv1d(h, w2) * s2[None] + b2[None], 0.0)
    return jnp.transpose(y, (0, 2, 1))


# --------------------------------------------------------------------------
if __name__ == "__main__":
    key = jax.random.PRNGKey(0)
    k1, k2, k3, k4 = jax.random.split(key, 4)

    # Generator.conv_1 : ConvBlock(1, 32, 32) at a small sequence length.
    N, L = 2, 64
    x1 = jax.random.normal(k1, (N, 1, L), jnp.float32)
    p1 = init_params(k2, 1, 32, 32)
    out1 = jax.block_until_ready(jax.jit(conv_block_pallas)(x1, p1))
    ref1 = jax.block_until_ready(conv_block_reference(x1, p1))
    assert out1.shape == (N, 32, L), out1.shape
    err1 = float(jnp.max(jnp.abs(out1 - ref1)))
    assert jnp.allclose(out1, ref1, atol=1e-4, rtol=1e-4), err1

    # Generator.conv_2 : ConvBlock(32, 64, 64) at the pooled sequence length.
    L2 = L // 4
    x2 = jax.random.normal(k3, (N, 32, L2), jnp.float32)
    p2 = init_params(k4, 32, 64, 64)
    out2 = jax.block_until_ready(jax.jit(conv_block_pallas)(x2, p2))
    ref2 = jax.block_until_ready(conv_block_reference(x2, p2))
    assert out2.shape == (N, 64, L2), out2.shape
    err2 = float(jnp.max(jnp.abs(out2 - ref2)))
    assert jnp.allclose(out2, ref2, atol=1e-4, rtol=1e-4), err2

    print("KERNEL_OK")
</pallas_src>

<mosaic_0001>
module attributes {stable_mosaic.version = 11 : i64} {
  func.func @_conv_block_kernel(%arg0: i32, %arg1: memref<64x1xbf16, #tpu.memory_space<vmem>>, %arg2: memref<3x32xbf16, #tpu.memory_space<vmem>>, %arg3: memref<1x32xf32, #tpu.memory_space<vmem>>, %arg4: memref<1x32xf32, #tpu.memory_space<vmem>>, %arg5: memref<96x32xbf16, #tpu.memory_space<vmem>>, %arg6: memref<1x32xf32, #tpu.memory_space<vmem>>, %arg7: memref<1x32xf32, #tpu.memory_space<vmem>>, %arg8: memref<64x32xf32, #tpu.memory_space<vmem>>) attributes {dimension_semantics = [#tpu.dimension_semantics<parallel>], iteration_bounds = array<i64: 2>, scalar_prefetch = 0 : i64, scratch_operands = 0 : i64, tpu.core_type = #tpu.core_type<tc>, window_params = [{transform_indices = @transform_0, window_bounds = array<i64: 64, 1>}, {pipeline_mode = #tpu.pipeline_mode<synchronous>, transform_indices = @transform_1, window_bounds = array<i64: 3, 32>}, {pipeline_mode = #tpu.pipeline_mode<synchronous>, transform_indices = @transform_2, window_bounds = array<i64: 1, 32>}, {pipeline_mode = #tpu.pipeline_mode<synchronous>, transform_indices = @transform_3, window_bounds = array<i64: 1, 32>}, {pipeline_mode = #tpu.pipeline_mode<synchronous>, transform_indices = @transform_4, window_bounds = array<i64: 96, 32>}, {pipeline_mode = #tpu.pipeline_mode<synchronous>, transform_indices = @transform_5, window_bounds = array<i64: 1, 32>}, {pipeline_mode = #tpu.pipeline_mode<synchronous>, transform_indices = @transform_6, window_bounds = array<i64: 1, 32>}, {transform_indices = @transform_7, window_bounds = array<i64: 64, 32>}]} {
    %0 = tpu.iota {dimensions = array<i32: 0>} : vector<64x1xi32>
    %c64_i32 = arith.constant 64 : i32
    %c0_i32 = arith.constant 0 : i32
    %1 = arith.cmpi eq, %c64_i32, %c0_i32 : i32
    %c1_i32 = arith.constant 1 : i32
    %2 = arith.select %1, %c1_i32, %c64_i32 : i32
    %3 = vector.broadcast %2 : i32 to vector<64x1xi32>
    %4 = arith.remsi %0, %3 : vector<64x1xi32>
    %c0_i32_0 = arith.constant 0 : i32
    %5 = vector.broadcast %c0_i32_0 : i32 to vector<64x1xi32>
    %6 = arith.cmpi ne, %4, %5 : vector<64x1xi32>
    %c0_i32_1 = arith.constant 0 : i32
    %7 = vector.broadcast %c0_i32_1 : i32 to vector<64x1xi32>
    %8 = arith.cmpi slt, %4, %7 : vector<64x1xi32>
    %c0_i32_2 = arith.constant 0 : i32
    %9 = arith.cmpi slt, %2, %c0_i32_2 : i32
    %10 = vector.broadcast %9 : i1 to vector<64x1xi1>
    %11 = vector.broadcast %10 : vector<64x1xi1> to vector<64x1xi1>
    %12 = arith.xori %8, %11 : vector<64x1xi1>
    %13 = arith.andi %12, %6 : vector<64x1xi1>
    %14 = vector.broadcast %2 : i32 to vector<64x1xi32>
    %15 = arith.addi %4, %14 : vector<64x1xi32>
    %16 = arith.select %13, %15, %4 : vector<64x1xi1>, vector<64x1xi32>
    %c0_i32_3 = arith.constant 0 : i32
    %17 = vector.broadcast %c0_i32_3 : i32 to vector<64x1xi32>
    %18 = arith.cmpi ne, %16, %17 : vector<64x1xi32>
    %c63_i32 = arith.constant 63 : i32
    %19 = vector.broadcast %c63_i32 : i32 to vector<64x1xi32>
    %20 = arith.cmpi ne, %16, %19 : vector<64x1xi32>
    %c0 = arith.constant 0 : index
    %c0_4 = arith.constant 0 : index
    %21 = vector.load %arg1[%c0, %c0_4] : memref<64x1xbf16, #tpu.memory_space<vmem>>, vector<64x1xbf16>
    %22 = arith.extf %21 : vector<64x1xbf16> to vector<64x1xf32>
    %c1_i32_5 = arith.constant 1 : i32
    %23 = tpu.dynamic_rotate %22 by %c1_i32_5 dim 0 : vector<64x1xf32>, i32 -> vector<64x1xf32>
    %cst = arith.constant 0.000000e+00 : f32
    %24 = vector.broadcast %cst : f32 to vector<64x1xf32>
    %25 = arith.select %18, %23, %24 : vector<64x1xi1>, vector<64x1xf32>
    %c63_i32_6 = arith.constant 63 : i32
    %26 = tpu.dynamic_rotate %22 by %c63_i32_6 dim 0 : vector<64x1xf32>, i32 -> vector<64x1xf32>
    %cst_7 = arith.constant 0.000000e+00 : f32
    %27 = vector.broadcast %cst_7 : f32 to vector<64x1xf32>
    %28 = arith.select %20, %26, %27 : vector<64x1xi1>, vector<64x1xf32>
    %c0_8 = arith.constant 0 : index
    %c0_9 = arith.constant 0 : index
    %29 = vector.load %arg2[%c0_8, %c0_9] : memref<3x32xbf16, #tpu.memory_space<vmem>>, vector<3x32xbf16>
    %30 = arith.extf %29 : vector<3x32xbf16> to vector<3x32xf32>
    %cst_10 = arith.constant 0.000000e+00 : f32
    %31 = vector.broadcast %cst_10 : f32 to vector<64x32xf32>
    %32 = vector.extract_strided_slice %30 {offsets = [0, 0], sizes = [1, 32], strides = [1, 1]} : vector<3x32xf32> to vector<1x32xf32>
    %33 = vector.shape_cast %32 : vector<1x32xf32> to vector<32xf32>
    %34 = vector.shape_cast %33 : vector<32xf32> to vector<1x32xf32>
    %35 = vector.broadcast %25 : vector<64x1xf32> to vector<64x32xf32>
    %36 = vector.broadcast %34 : vector<1x32xf32> to vector<64x32xf32>
    %37 = arith.mulf %35, %36 : vector<64x32xf32>
    %38 = arith.addf %31, %37 : vector<64x32xf32>
    %39 = vector.extract_strided_slice %30 {offsets = [1, 0], sizes = [1, 32], strides = [1, 1]} : vector<3x32xf32> to vector<1x32xf32>
    %40 = vector.shape_cast %39 : vector<1x32xf32> to vector<32xf32>
    %41 = vector.shape_cast %40 : vector<32xf32> to vector<1x32xf32>
    %42 = vector.broadcast %22 : vector<64x1xf32> to vector<64x32xf32>
    %43 = vector.broadcast %41 : vector<1x32xf32> to vector<64x32xf32>
    %44 = arith.mulf %42, %43 : vector<64x32xf32>
    %45 = arith.addf %38, %44 : vector<64x32xf32>
    %46 = vector.extract_strided_slice %30 {offsets = [2, 0], sizes = [1, 32], strides = [1, 1]} : vector<3x32xf32> to vector<1x32xf32>
    %47 = vector.shape_cast %46 : vector<1x32xf32> to vector<32xf32>
    %48 = vector.shape_cast %47 : vector<32xf32> to vector<1x32xf32>
    %49 = vector.broadcast %28 : vector<64x1xf32> to vector<64x32xf32>
    %50 = vector.broadcast %48 : vector<1x32xf32> to vector<64x32xf32>
    %51 = arith.mulf %49, %50 : vector<64x32xf32>
    %52 = arith.addf %45, %51 : vector<64x32xf32>
    %c0_11 = arith.constant 0 : index
    %c0_12 = arith.constant 0 : index
    %53 = vector.load %arg3[%c0_11, %c0_12] : memref<1x32xf32, #tpu.memory_space<vmem>>, vector<1x32xf32>
    %54 = vector.shape_cast %53 : vector<1x32xf32> to vector<32xf32>
    %55 = vector.shape_cast %54 : vector<32xf32> to vector<1x32xf32>
    %56 = vector.broadcast %55 : vector<1x32xf32> to vector<64x32xf32>
    %57 = arith.mulf %52, %56 : vector<64x32xf32>
    %c0_13 = arith.constant 0 : index
    %c0_14 = arith.constant 0 : index
    %58 = vector.load %arg4[%c0_13, %c0_14] : memref<1x32xf32, #tpu.memory_space<vmem>>, vector<1x32xf32>
    %59 = vector.shape_cast %58 : vector<1x32xf32> to vector<32xf32>
    %60 = vector.shape_cast %59 : vector<32xf32> to vector<1x32xf32>
    %61 = vector.broadcast %60 : vector<1x32xf32> to vector<64x32xf32>
    %62 = arith.addf %57, %61 : vector<64x32xf32>
    %cst_15 = arith.constant 0.000000e+00 : f32
    %63 = vector.broadcast %cst_15 : f32 to vector<64x32xf32>
    %64 = arith.maximumf %62, %63 : vector<64x32xf32>
    %c1_i32_16 = arith.constant 1 : i32
    %65 = tpu.dynamic_rotate %64 by %c1_i32_16 dim 0 : vector<64x32xf32>, i32 -> vector<64x32xf32>
    %cst_17 = arith.constant 0.000000e+00 : f32
    %66 = vector.shape_cast %18 : vector<64x1xi1> to vector<64x1xi1>
    %67 = vector.broadcast %66 : vector<64x1xi1> to vector<64x32xi1>
    %68 = vector.broadcast %cst_17 : f32 to vector<64x32xf32>
    %69 = arith.select %67, %65, %68 : vector<64x32xi1>, vector<64x32xf32>
    %c63_i32_18 = arith.constant 63 : i32
    %70 = tpu.dynamic_rotate %64 by %c63_i32_18 dim 0 : vector<64x32xf32>, i32 -> vector<64x32xf32>
    %cst_19 = arith.constant 0.000000e+00 : f32
    %71 = vector.shape_cast %20 : vector<64x1xi1> to vector<64x1xi1>
    %72 = vector.broadcast %71 : vector<64x1xi1> to vector<64x32xi1>
    %73 = vector.broadcast %cst_19 : f32 to vector<64x32xf32>
    %74 = arith.select %72, %70, %73 : vector<64x32xi1>, vector<64x32xf32>
    %75 = tpu.concatenate %69, %64, %74 in 1 : vector<64x32xf32>, vector<64x32xf32>, vector<64x32xf32> -> vector<64x96xf32>
    %76 = arith.truncf %75 : vector<64x96xf32> to vector<64x96xbf16>
    %c0_20 = arith.constant 0 : index
    %c0_21 = arith.constant 0 : index
    %77 = vector.load %arg5[%c0_20, %c0_21] : memref<96x32xbf16, #tpu.memory_space<vmem>>, vector<96x32xbf16>
    %cst_22 = arith.constant dense<0.000000e+00> : vector<64x32xf32>
    %78 = tpu.matmul %76, %77, %cst_22 {dimension_numbers = #tpu.dot_dimension_numbers<[1], [0], [0], [1], [0, 0, 1, 1], [], []>} : vector<64x96xbf16>, vector<96x32xbf16>, vector<64x32xf32> -> vector<64x32xf32>
    %c0_23 = arith.constant 0 : index
    %c0_24 = arith.constant 0 : index
    %79 = vector.load %arg6[%c0_23, %c0_24] : memref<1x32xf32, #tpu.memory_space<vmem>>, vector<1x32xf32>
    %80 = vector.shape_cast %79 : vector<1x32xf32> to vector<32xf32>
    %81 = vector.shape_cast %80 : vector<32xf32> to vector<1x32xf32>
    %82 = vector.broadcast %81 : vector<1x32xf32> to vector<64x32xf32>
    %83 = arith.mulf %78, %82 : vector<64x32xf32>
    %c0_25 = arith.constant 0 : index
    %c0_26 = arith.constant 0 : index
    %84 = vector.load %arg7[%c0_25, %c0_26] : memref<1x32xf32, #tpu.memory_space<vmem>>, vector<1x32xf32>
    %85 = vector.shape_cast %84 : vector<1x32xf32> to vector<32xf32>
    %86 = vector.shape_cast %85 : vector<32xf32> to vector<1x32xf32>
    %87 = vector.broadcast %86 : vector<1x32xf32> to vector<64x32xf32>
    %88 = arith.addf %83, %87 : vector<64x32xf32>
    %cst_27 = arith.constant 0.000000e+00 : f32
    %89 = vector.broadcast %cst_27 : f32 to vector<64x32xf32>
    %90 = arith.maximumf %88, %89 : vector<64x32xf32>
    %c0_28 = arith.constant 0 : index
    %c0_29 = arith.constant 0 : index
    %91 = vector.load %arg8[%c0_28, %c0_29] : memref<64x32xf32, #tpu.memory_space<vmem>>, vector<64x32xf32>
    tpu.vector_store %arg8[%c0_28, %c0_29], %90 {strides = array<i32>} : memref<64x32xf32, #tpu.memory_space<vmem>>, vector<64x32xf32>,
    return
  }
  func.func @transform_0(%arg0: i32) -> (i32, i32) {
    %c0_i32 = arith.constant 0 : i32
    %c0_i32_0 = arith.constant 0 : i32
    return %arg0, %c0_i32 : i32, i32
  }
  func.func @transform_1(%arg0: i32) -> (i32, i32) {
    %c0_i32 = arith.constant 0 : i32
    %c0_i32_0 = arith.constant 0 : i32
    %c0_i32_1 = arith.constant 0 : i32
    return %c0_i32, %c0_i32_0 : i32, i32
  }
  func.func @transform_2(%arg0: i32) -> (i32, i32) {
    %c0_i32 = arith.constant 0 : i32
    %c0_i32_0 = arith.constant 0 : i32
    %c0_i32_1 = arith.constant 0 : i32
    return %c0_i32, %c0_i32_0 : i32, i32
  }
  func.func @transform_3(%arg0: i32) -> (i32, i32) {
    %c0_i32 = arith.constant 0 : i32
    %c0_i32_0 = arith.constant 0 : i32
    %c0_i32_1 = arith.constant 0 : i32
    return %c0_i32, %c0_i32_0 : i32, i32
  }
  func.func @transform_4(%arg0: i32) -> (i32, i32) {
    %c0_i32 = arith.constant 0 : i32
    %c0_i32_0 = arith.constant 0 : i32
    %c0_i32_1 = arith.constant 0 : i32
    return %c0_i32, %c0_i32_0 : i32, i32
  }
  func.func @transform_5(%arg0: i32) -> (i32, i32) {
    %c0_i32 = arith.constant 0 : i32
    %c0_i32_0 = arith.constant 0 : i32
    %c0_i32_1 = arith.constant 0 : i32
    return %c0_i32, %c0_i32_0 : i32, i32
  }
  func.func @transform_6(%arg0: i32) -> (i32, i32) {
    %c0_i32 = arith.constant 0 : i32
    %c0_i32_0 = arith.constant 0 : i32
    %c0_i32_1 = arith.constant 0 : i32
    return %c0_i32, %c0_i32_0 : i32, i32
  }
  func.func @transform_7(%arg0: i32) -> (i32, i32) {
    %c0_i32 = arith.constant 0 : i32
    %c0_i32_0 = arith.constant 0 : i32
    return %arg0, %c0_i32 : i32, i32
  }
}

</mosaic_0001>

<llo_original>
// kernel: conv_block_pallas.1
$region0: #{conv_block_pallas.1}
  #allocation0 [shape = 'u32[]', space=smem, size = 0x4, offset = 0x4, fixed_abs, tag = 'smem constant byte address 0x4 - core index']
  #allocation1 [shape = 'u32[144,128]{1,0:T(1,128)}', space=vmem, size = 0x12000, scoped, tag = 'internal scratch']
  %s0 = inlined_call_operand.vmem [shape: bf16[128,1], index: 0, kind: input, shape index: {}]
  %s1 = inlined_call_operand.vmem [shape: bf16[3,32], index: 1, kind: input, shape index: {}]
  %s2 = inlined_call_operand.vmem [shape: f32[1,32], index: 2, kind: input, shape index: {}]
  %s3 = inlined_call_operand.vmem [shape: f32[1,32], index: 3, kind: input, shape index: {}]
  %s4 = inlined_call_operand.vmem [shape: bf16[96,32], index: 4, kind: input, shape index: {}]
  %s5 = inlined_call_operand.vmem [shape: f32[1,32], index: 5, kind: input, shape index: {}]
  %s6 = inlined_call_operand.vmem [shape: f32[1,32], index: 6, kind: input, shape index: {}]
  %s7 = inlined_call_operand.vmem [shape: f32[128,32], index: 7, kind: output, shape index: {}]
  %s8 = sld [smem:[#allocation0]]
  $region61: #{conv_block_pallas.1} parent=0
    _
  %s10 = ssub.s32 1, %s8
  %s11 = scalar_select 0, %s10, %s8
  loop: start=0, step=1, limit=4
  $region2: #{conv_block_pallas.1} parent=0 // loop_pre_header
    _
  $region3: #{conv_block_pallas.1} parent=0 // loop_header
    %s13 = sphi 0, %s17
    %p14 = scmp.ge.s32.totalorder %s13, 4
    %s23 = sphi 0, %s25
    %s26 = sphi 0, %s23
    %s27 = sphi 0, %s26
    %s43 = sphi 0, %s27
    %s47 = sphi 0, %s47
    %s49 = sphi 0, %s47
    %s50 = sphi 0, %s49
    %s64 = sphi 0, %s50
    %s68 = sphi 0, %s68
    %s70 = sphi 0, %s68
    %s71 = sphi 0, %s70
    %s85 = sphi 0, %s71
    %s89 = sphi 0, %s89
    %s91 = sphi 0, %s89
    %s92 = sphi 0, %s91
    %s106 = sphi 0, %s92
    %s110 = sphi 0, %s110
    %s112 = sphi 0, %s110
    %s113 = sphi 0, %s112
    %s127 = sphi 0, %s113
    %s131 = sphi 0, %s131
    %s133 = sphi 0, %s131
    %s134 = sphi 0, %s133
    %s148 = sphi 0, %s134
    %s152 = sphi 0, %s152
    %s154 = sphi 0, %s152
    %s155 = sphi 0, %s154
    %s169 = sphi 0, %s155
    %s175 = sphi 0, %s177
    %s178 = sphi 0, %s175
    %s179 = sphi 0, %s178
    %s195 = sphi 0, %s179
  $region4: #{conv_block_pallas.1} parent=0 // loop_header_branch
    %16 = sbr.rel (%p14) target = $region8
  $region5: #{conv_block_pallas.1} parent=0 // loop_body
    %s18 = ssub.s32 %s13, 1
    %s19 = ssub.s32 %s13, 2
    %s20 = sadd.s32 %s13, 1
    %s21 = ssub.s32 %s13, %s20
    %p22 = scmp.eq.s32.totalorder %s21, 0
    %s24 = sadd.s32 %s23, 1
    %s25 = scalar_select %p22, %s23, %s24
    %p28 = pneg %p22
    %p29 = scmp.eq.s32.totalorder %s13, 1
    %p30 = por %p28, %p29
    %p31 = scmp.ne.s32.totalorder %s23, %s26
    %p32 = scmp.eq.s32.totalorder %s13, 0
    %p33 = por %p31, %p32
    %p34 = scmp.ne.s32.totalorder %s23, %s26
    %p35 = scmp.eq.s32.totalorder %s18, 1
    %p36 = por %p34, %p35
    %p37 = scmp.ne.s32.totalorder %s26, %s27
    %p38 = scmp.eq.s32.totalorder %s18, 0
    %p39 = por %p37, %p38
    %p40 = scmp.ne.s32.totalorder %s26, %s27
    %p41 = scmp.eq.s32.totalorder %s19, 1
    %p42 = por %p40, %p41
    %p44 = scmp.ne.s32.totalorder %s27, %s43
    %p45 = scmp.eq.s32.totalorder %s19, 0
    %p46 = por %p44, %p45
    %s48 = sadd.s32 %s47, 1
    %p51 = scmp.eq.s32.totalorder %s13, 1
    %p52 = scmp.ne.s32.totalorder %s47, %s49
    %p53 = scmp.eq.s32.totalorder %s13, 0
    %p54 = por %p52, %p53
    %p55 = scmp.ne.s32.totalorder %s47, %s49
    %p56 = scmp.eq.s32.totalorder %s18, 1
    %p57 = por %p55, %p56
    %p58 = scmp.ne.s32.totalorder %s49, %s50
    %p59 = scmp.eq.s32.totalorder %s18, 0
    %p60 = por %p58, %p59
    %p61 = scmp.ne.s32.totalorder %s49, %s50
    %p62 = scmp.eq.s32.totalorder %s19, 1
    %p63 = por %p61, %p62
    %p65 = scmp.ne.s32.totalorder %s50, %s64
    %p66 = scmp.eq.s32.totalorder %s19, 0
    %p67 = por %p65, %p66
    %s69 = sadd.s32 %s68, 1
    %p72 = scmp.eq.s32.totalorder %s13, 1
    %p73 = scmp.ne.s32.totalorder %s68, %s70
    %p74 = scmp.eq.s32.totalorder %s13, 0
    %p75 = por %p73, %p74
    %p76 = scmp.ne.s32.totalorder %s68, %s70
    %p77 = scmp.eq.s32.totalorder %s18, 1
    %p78 = por %p76, %p77
    %p79 = scmp.ne.s32.totalorder %s70, %s71
    %p80 = scmp.eq.s32.totalorder %s18, 0
    %p81 = por %p79, %p80
    %p82 = scmp.ne.s32.totalorder %s70, %s71
    %p83 = scmp.eq.s32.totalorder %s19, 1
    %p84 = por %p82, %p83
    %p86 = scmp.ne.s32.totalorder %s71, %s85
    %p87 = scmp.eq.s32.totalorder %s19, 0
    %p88 = por %p86, %p87
    %s90 = sadd.s32 %s89, 1
    %p93 = scmp.eq.s32.totalorder %s13, 1
    %p94 = scmp.ne.s32.totalorder %s89, %s91
    %p95 = scmp.eq.s32.totalorder %s13, 0
    %p96 = por %p94, %p95
    %p97 = scmp.ne.s32.totalorder %s89, %s91
    %p98 = scmp.eq.s32.totalorder %s18, 1
    %p99 = por %p97, %p98
    %p100 = scmp.ne.s32.totalorder %s91, %s92
    %p101 = scmp.eq.s32.totalorder %s18, 0
    %p102 = por %p100, %p101
    %p103 = scmp.ne.s32.totalorder %s91, %s92
    %p104 = scmp.eq.s32.totalorder %s19, 1
    %p105 = por %p103, %p104
    %p107 = scmp.ne.s32.totalorder %s92, %s106
    %p108 = scmp.eq.s32.totalorder %s19, 0
    %p109 = por %p107, %p108
    %s111 = sadd.s32 %s110, 1
    %p114 = scmp.eq.s32.totalorder %s13, 1
    %p115 = scmp.ne.s32.totalorder %s110, %s112
    %p116 = scmp.eq.s32.totalorder %s13, 0
    %p117 = por %p115, %p116
    %p118 = scmp.ne.s32.totalorder %s110, %s112
    %p119 = scmp.eq.s32.totalorder %s18, 1
    %p120 = por %p118, %p119
    %p121 = scmp.ne.s32.totalorder %s112, %s113
    %p122 = scmp.eq.s32.totalorder %s18, 0
    %p123 = por %p121, %p122
    %p124 = scmp.ne.s32.totalorder %s112, %s113
    %p125 = scmp.eq.s32.totalorder %s19, 1
    %p126 = por %p124, %p125
    %p128 = scmp.ne.s32.totalorder %s113, %s127
    %p129 = scmp.eq.s32.totalorder %s19, 0
    %p130 = por %p128, %p129
    %s132 = sadd.s32 %s131, 1
    %p135 = scmp.eq.s32.totalorder %s13, 1
    %p136 = scmp.ne.s32.totalorder %s131, %s133
    %p137 = scmp.eq.s32.totalorder %s13, 0
    %p138 = por %p136, %p137
    %p139 = scmp.ne.s32.totalorder %s131, %s133
    %p140 = scmp.eq.s32.totalorder %s18, 1
    %p141 = por %p139, %p140
    %p142 = scmp.ne.s32.totalorder %s133, %s134
    %p143 = scmp.eq.s32.totalorder %s18, 0
    %p144 = por %p142, %p143
    %p145 = scmp.ne.s32.totalorder %s133, %s134
    %p146 = scmp.eq.s32.totalorder %s19, 1
    %p147 = por %p145, %p146
    %p149 = scmp.ne.s32.totalorder %s134, %s148
    %p150 = scmp.eq.s32.totalorder %s19, 0
    %p151 = por %p149, %p150
    %s153 = sadd.s32 %s152, 1
    %p156 = scmp.eq.s32.totalorder %s13, 1
    %p157 = scmp.ne.s32.totalorder %s152, %s154
    %p158 = scmp.eq.s32.totalorder %s13, 0
    %p159 = por %p157, %p158
    %p160 = scmp.ne.s32.totalorder %s152, %s154
    %p161 = scmp.eq.s32.totalorder %s18, 1
    %p162 = por %p160, %p161
    %p163 = scmp.ne.s32.totalorder %s154, %s155
    %p164 = scmp.eq.s32.totalorder %s18, 0
    %p165 = por %p163, %p164
    %p166 = scmp.ne.s32.totalorder %s154, %s155
    %p167 = scmp.eq.s32.totalorder %s19, 1
    %p168 = por %p166, %p167
    %p170 = scmp.ne.s32.totalorder %s155, %s169
    %p171 = scmp.eq.s32.totalorder %s19, 0
    %p172 = por %p170, %p171
    %s173 = ssub.s32 %s13, %s20
    %p174 = scmp.eq.s32.totalorder %s173, 0
    %s176 = sadd.s32 %s175, 1
    %s177 = scalar_select %p174, %s175, %s176
    %p180 = pneg %p174
    %p181 = scmp.eq.s32.totalorder %s13, 1
    %p182 = por %p180, %p181
    %p183 = scmp.ne.s32.totalorder %s175, %s178
    %p184 = scmp.eq.s32.totalorder %s13, 0
    %p185 = por %p183, %p184
    %p186 = scmp.ne.s32.totalorder %s175, %s178
    %p187 = scmp.eq.s32.totalorder %s18, 1
    %p188 = por %p186, %p187
    %p189 = scmp.ne.s32.totalorder %s178, %s179
    %p190 = scmp.eq.s32.totalorder %s18, 0
    %p191 = por %p189, %p190
    %p192 = scmp.ne.s32.totalorder %s178, %s179
    %p193 = scmp.eq.s32.totalorder %s19, 1
    %p194 = por %p192, %p193
    %p196 = scmp.ne.s32.totalorder %s179, %s195
    %p197 = scmp.eq.s32.totalorder %s19, 0
    %p198 = por %p196, %p197
    %p199 = scmp.le.s32.totalorder 1, %s13
    %p200 = scmp.lt.s32.totalorder %s13, 3
    %p201 = pnand %p199, %p200
    %p202 = pneg %p201
    // Predicated region
    $region9: #{conv_block_pallas.1} parent=5 // pred_check
      _
    $region10: #{conv_block_pallas.1} parent=5 // pred_check_branch
      %204 = sbr.rel (%p201) target = $region12
    $region11: #{conv_block_pallas.1} parent=5 // pred_region
      %s205 = ssub.s32 %s13, 1
      // Predicated region
      $region13: #{conv_block_pallas.1} parent=11 // pred_check
        %p206 = pneg %p60
      $region14: #{conv_block_pallas.1} parent=11 // pred_check_branch
        %208 = sbr.rel (%p206) target = $region16
      $region15: #{conv_block_pallas.1} parent=11 // pred_region
        _
      $region16: #{conv_block_pallas.1} parent=11 // pred_fallthru
        _
      // Predicated region
      $region17: #{conv_block_pallas.1} parent=11 // pred_check
        %p209 = pneg %p81
      $region18: #{conv_block_pallas.1} parent=11 // pred_check_branch
        %211 = sbr.rel (%p209) target = $region20
      $region19: #{conv_block_pallas.1} parent=11 // pred_region
        _
      $region20: #{conv_block_pallas.1} parent=11 // pred_fallthru
        _
      // Predicated region
      $region21: #{conv_block_pallas.1} parent=11 // pred_check
        %p212 = pneg %p102
      $region22: #{conv_block_pallas.1} parent=11 // pred_check_branch
        %214 = sbr.rel (%p212) target = $region24
      $region23: #{conv_block_pallas.1} parent=11 // pred_region
        _
      $region24: #{conv_block_pallas.1} parent=11 // pred_fallthru
        _
      // Predicated region
      $region25: #{conv_block_pallas.1} parent=11 // pred_check
        %p215 = pneg %p123
      $region26: #{conv_block_pallas.1} parent=11 // pred_check_branch
        %217 = sbr.rel (%p215) target = $region28
      $region27: #{conv_block_pallas.1} parent=11 // pred_region
        _
      $region28: #{conv_block_pallas.1} parent=11 // pred_fallthru
        _
      // Predicated region
      $region29: #{conv_block_pallas.1} parent=11 // pred_check
        %p218 = pneg %p144
      $region30: #{conv_block_pallas.1} parent=11 // pred_check_branch
        %220 = sbr.rel (%p218) target = $region32
      $region31: #{conv_block_pallas.1} parent=11 // pred_region
        _
      $region32: #{conv_block_pallas.1} parent=11 // pred_fallthru
        _
      // Predicated region
      $region33: #{conv_block_pallas.1} parent=11 // pred_check
        %p221 = pneg %p165
      $region34: #{conv_block_pallas.1} parent=11 // pred_check_branch
        %223 = sbr.rel (%p221) target = $region36
      $region35: #{conv_block_pallas.1} parent=11 // pred_region
        _
      $region36: #{conv_block_pallas.1} parent=11 // pred_fallthru
        _
    $region12: #{conv_block_pallas.1} parent=5 // pred_fallthru
      _
    %p224 = scmp.lt.s32.totalorder %s13, 2
    // Predicated region
    $region37: #{conv_block_pallas.1} parent=5 // pred_check
      %p225 = pneg %p224
    $region38: #{conv_block_pallas.1} parent=5 // pred_check_branch
      %227 = sbr.rel (%p225) target = $region40
    $region39: #{conv_block_pallas.1} parent=5 // pred_region
      // Predicated region
      $region41: #{conv_block_pallas.1} parent=39 // pred_check
        %p228 = pneg %p33
      $region42: #{conv_block_pallas.1} parent=39 // pred_check_branch
        %230 = sbr.rel (%p228) target = $region44
      $region43: #{conv_block_pallas.1} parent=39 // pred_region
        %s231 = smul.u32 8, %s13
        %p232 = scmp.lt.s32.totalorder %s231, 15
        %s233 = scalar_select %p232, %s231, 15
        %s234 = smul.addr %s233, 4
        %s235 = scalar_lea.vmem %s0, %s234
        %s236 = smul.u32 8, %s13
      $region44: #{conv_block_pallas.1} parent=39 // pred_fallthru
        _
    $region40: #{conv_block_pallas.1} parent=5 // pred_fallthru
      _
    %p237 = scmp.le.s32.totalorder 1, %s13
    %p238 = scmp.lt.s32.totalorder %s13, 3
    %p239 = pnand %p237, %p238
    %p240 = pneg %p239
    // Predicated region
    $region45: #{conv_block_pallas.1} parent=5 // pred_check
      _
    $region46: #{conv_block_pallas.1} parent=5 // pred_check_branch
      %242 = sbr.rel (%p239) target = $region48
    $region47: #{conv_block_pallas.1} parent=5 // pred_region
      %s243 = ssub.s32 %s13, 1
      %s244 = smul.u32 8, %s18
      %p245 = scmp.lt.s32.totalorder %s244, 15
      %s246 = scalar_select %p245, %s244, 15
      %s247 = smul.addr %s246, 4
      %s248 = scalar_lea.vmem %s0, %s247
      %p249 = pneg %p39
      %p250 = pneg %p36
      %p251 = pneg %p60
      %p252 = pneg %p57
      %p253 = pneg %p81
      %p254 = pneg %p78
      %p255 = pneg %p102
      %p256 = pneg %p99
      %p257 = pneg %p123
      %p258 = pneg %p120
      %p259 = pneg %p144
      %p260 = pneg %p141
      %p261 = pneg %p165
      %p262 = pneg %p162
      %p263 = pneg %p191
      %p264 = pneg %p188
      %s265 = smul.u32 8, %s18
      %p266 = scmp.lt.s32.totalorder %s265, 15
      %s267 = scalar_select %p266, %s265, 15
      %s268 = smul.addr %s267, 8
      %s269 = scalar_lea.vmem %s7, %s268
      %s270 = smul.u32 8, %s18
      %p271 = scmp.lt.s32.totalorder %s270, 15
      %s272 = scalar_select %p271, %s270, 15
      %s273 = smul.addr %s272, 4
      %s274 = scalar_lea.vmem %s0, %s273
      %s275 = smul.u32 8, %s18
      %s276 = smul.u32 8, %s18
      %p277 = scmp.lt.s32.totalorder %s276, 15
      %s278 = scalar_select %p277, %s276, 15
      %s279 = smul.addr %s278, 8
      %s280 = scalar_lea.vmem %s7, %s279
      %s281 = smul.u32 8, %s18
      %v283 = vlaneseq
      %v284 = vshrl.u32 %v283, 7
      %v285 = vadd.s32 %v284, 8
      %v286 = vadd.s32 %v284, 16
      %v287 = vadd.s32 %v284, 24
      %v288 = vadd.s32 %v284, 32
      %v289 = vadd.s32 %v284, 40
      %v290 = vadd.s32 %v284, 48
      %v291 = vadd.s32 %v284, 56
      %vm292 = vcmp.lt.s32.totalorder %v284, 0
      %v293 = vsub.s32 0, %v284
      %v294 = vsel %vm292, %v293, %v284
      %v295 = vshrl.u32 %v294, 6
      %v296 = vand.u32 %v294, 63
      %v297 = vsub.s32 0, %v296
      %v298 = vsel %vm292, %v297, %v296
      %vm299 = vcmp.lt.s32.totalorder %v285, 0
      %v300 = vsub.s32 0, %v285
      %v301 = vsel %vm299, %v300, %v285
      %v302 = vshrl.u32 %v301, 6
      %v303 = vand.u32 %v301, 63
      %v304 = vsub.s32 0, %v303
      %v305 = vsel %vm299, %v304, %v303
      %vm306 = vcmp.lt.s32.totalorder %v286, 0
      %v307 = vsub.s32 0, %v286
      %v308 = vsel %vm306, %v307, %v286
      %v309 = vshrl.u32 %v308, 6
      %v310 = vand.u32 %v308, 63
      %v311 = vsub.s32 0, %v310
      %v312 = vsel %vm306, %v311, %v310
      %vm313 = vcmp.lt.s32.totalorder %v287, 0
      %v314 = vsub.s32 0, %v287
      %v315 = vsel %vm313, %v314, %v287
      %v316 = vshrl.u32 %v315, 6
      %v317 = vand.u32 %v315, 63
      %v318 = vsub.s32 0, %v317
      %v319 = vsel %vm313, %v318, %v317
      %vm320 = vcmp.lt.s32.totalorder %v288, 0
      %v321 = vsub.s32 0, %v288
      %v322 = vsel %vm320, %v321, %v288
      %v323 = vshrl.u32 %v322, 6
      %v324 = vand.u32 %v322, 63
      %v325 = vsub.s32 0, %v324
      %v326 = vsel %vm320, %v325, %v324
      %vm327 = vcmp.lt.s32.totalorder %v289, 0
      %v328 = vsub.s32 0, %v289
      %v329 = vsel %vm327, %v328, %v289
      %v330 = vshrl.u32 %v329, 6
      %v331 = vand.u32 %v329, 63
      %v332 = vsub.s32 0, %v331
      %v333 = vsel %vm327, %v332, %v331
      %vm334 = vcmp.lt.s32.totalorder %v290, 0
      %v335 = vsub.s32 0, %v290
      %v336 = vsel %vm334, %v335, %v290
      %v337 = vshrl.u32 %v336, 6
      %v338 = vand.u32 %v336, 63
      %v339 = vsub.s32 0, %v338
      %v340 = vsel %vm334, %v339, %v338
      %vm341 = vcmp.lt.s32.totalorder %v291, 0
      %v342 = vsub.s32 0, %v291
      %v343 = vsel %vm341, %v342, %v291
      %v344 = vshrl.u32 %v343, 6
      %v345 = vand.u32 %v343, 63
      %v346 = vsub.s32 0, %v345
      %v347 = vsel %vm341, %v346, %v345
      %vm348 = vcmp.ne.s32.totalorder %v298, 0
      %vm349 = vcmp.ne.s32.totalorder %v305, 0
      %vm350 = vcmp.ne.s32.totalorder %v312, 0
      %vm351 = vcmp.ne.s32.totalorder %v319, 0
      %vm352 = vcmp.ne.s32.totalorder %v326, 0
      %vm353 = vcmp.ne.s32.totalorder %v333, 0
      %vm354 = vcmp.ne.s32.totalorder %v340, 0
      %vm355 = vcmp.ne.s32.totalorder %v347, 0
      %vm356 = vcmp.lt.s32.totalorder %v298, 0
      %vm357 = vcmp.lt.s32.totalorder %v305, 0
      %vm358 = vcmp.lt.s32.totalorder %v312, 0
      %vm359 = vcmp.lt.s32.totalorder %v319, 0
      %vm360 = vcmp.lt.s32.totalorder %v326, 0
      %vm361 = vcmp.lt.s32.totalorder %v333, 0
      %vm362 = vcmp.lt.s32.totalorder %v340, 0
      %vm363 = vcmp.lt.s32.totalorder %v347, 0
      %vm364 = vmand %vm356, %vm348
      %vm365 = vmand %vm357, %vm349
      %vm366 = vmand %vm358, %vm350
      %vm367 = vmand %vm359, %vm351
      %vm368 = vmand %vm360, %vm352
      %vm369 = vmand %vm361, %vm353
      %vm370 = vmand %vm362, %vm354
      %vm371 = vmand %vm363, %vm355
      %v372 = vadd.s32 %v298, 64
      %v373 = vadd.s32 %v305, 64
      %v374 = vadd.s32 %v312, 64
      %v375 = vadd.s32 %v319, 64
      %v376 = vadd.s32 %v326, 64
      %v377 = vadd.s32 %v333, 64
      %v378 = vadd.s32 %v340, 64
      %v379 = vadd.s32 %v347, 64
      %v380 = vsel %vm364, %v372, %v298
      %v381 = vsel %vm365, %v373, %v305
      %v382 = vsel %vm366, %v374, %v312
      %v383 = vsel %vm367, %v375, %v319
      %v384 = vsel %vm368, %v376, %v326
      %v385 = vsel %vm369, %v377, %v333
      %v386 = vsel %vm370, %v378, %v340
      %v387 = vsel %vm371, %v379, %v347
      %vm388 = vcmp.ne.s32.totalorder %v380, 0
      %vm389 = vcmp.ne.s32.totalorder %v381, 0
      %vm390 = vcmp.ne.s32.totalorder %v382, 0
      %vm391 = vcmp.ne.s32.totalorder %v383, 0
      %vm392 = vcmp.ne.s32.totalorder %v384, 0
      %vm393 = vcmp.ne.s32.totalorder %v385, 0
      %vm394 = vcmp.ne.s32.totalorder %v386, 0
      %vm395 = vcmp.ne.s32.totalorder %v387, 0
      %vm396 = vcmp.ne.s32.totalorder %v380, 63
      %vm397 = vcmp.ne.s32.totalorder %v381, 63
      %vm398 = vcmp.ne.s32.totalorder %v382, 63
      %vm399 = vcmp.ne.s32.totalorder %v383, 63
      %vm400 = vcmp.ne.s32.totalorder %v384, 63
      %vm401 = vcmp.ne.s32.totalorder %v385, 63
      %vm402 = vcmp.ne.s32.totalorder %v386, 63
      %vm403 = vcmp.ne.s32.totalorder %v387, 63
      %v404 = vld [vmem:[%s274] sm:$0xf]
      %v405 = vld [vmem:[%s274 + $0x4] sm:$0xf]
      %v406 = vld [vmem:[%s274 + $0x8] sm:$0xf]
      %v407 = vld [vmem:[%s274 + $0xc] sm:$0xf]
      %v408 = vld [vmem:[%s274 + $0x10] sm:$0xf]
      %v409 = vld [vmem:[%s274 + $0x14] sm:$0xf]
      %v410 = vld [vmem:[%s274 + $0x18] sm:$0xf]
      %v411 = vld [vmem:[%s274 + $0x1c] sm:$0xf]
      %v412 = vunpack.c.l.bf16 %v404
      %v413 = vunpack.c.l.bf16 %v405
      %v414 = vunpack.c.l.bf16 %v406
      %v415 = vunpack.c.l.bf16 %v407
      %v416 = vunpack.c.l.bf16 %v408
      %v417 = vunpack.c.l.bf16 %v409
      %v418 = vunpack.c.l.bf16 %v410
      %v419 = vunpack.c.l.bf16 %v411
      %v420 = vrot.slane %v412, 7
      %v421 = vrot.slane %v413, 7
      %v422 = vrot.slane %v414, 7
      %v423 = vrot.slane %v415, 7
      %v424 = vrot.slane %v416, 7
      %v425 = vrot.slane %v417, 7
      %v426 = vrot.slane %v418, 7
      %v427 = vrot.slane %v419, 7
      %vm428 = vcmp.lt.s32.totalorder %v284, 1
      %v429 = vsel %vm428, %v426, %v427
      %v430 = vsel %vm428, %v425, %v426
      %v431 = vsel %vm428, %v424, %v425
      %v432 = vsel %vm428, %v423, %v424
      %v433 = vsel %vm428, %v422, %v423
      %v434 = vsel %vm428, %v421, %v422
      %v435 = vsel %vm428, %v420, %v421
      %v436 = vsel %vm428, %v427, %v420
      %v437 = vsel %vm388, %v436, 0.0
      %v438 = vsel %vm389, %v435, 0.0
      %v439 = vsel %vm390, %v434, 0.0
      %v440 = vsel %vm391, %v433, 0.0
      %v441 = vsel %vm392, %v432, 0.0
      %v442 = vsel %vm393, %v431, 0.0
      %v443 = vsel %vm394, %v430, 0.0
      %v444 = vsel %vm395, %v429, 0.0
      %v445 = vrot.slane %v412, 1
      %v446 = vrot.slane %v413, 1
      %v447 = vrot.slane %v414, 1
      %v448 = vrot.slane %v415, 1
      %v449 = vrot.slane %v416, 1
      %v450 = vrot.slane %v417, 1
      %v451 = vrot.slane %v418, 1
      %v452 = vrot.slane %v419, 1
      %vm453 = vcmp.lt.s32.totalorder %v284, 7
      %v454 = vsel %vm453, %v451, %v452
      %v455 = vsel %vm453, %v450, %v451
      %v456 = vsel %vm453, %v449, %v450
      %v457 = vsel %vm453, %v448, %v449
      %v458 = vsel %vm453, %v447, %v448
      %v459 = vsel %vm453, %v446, %v447
      %v460 = vsel %vm453, %v445, %v446
      %v461 = vsel %vm453, %v452, %v445
      %v462 = vsel %vm396, %v460, 0.0
      %v463 = vsel %vm397, %v459, 0.0
      %v464 = vsel %vm398, %v458, 0.0
      %v465 = vsel %vm399, %v457, 0.0
      %v466 = vsel %vm400, %v456, 0.0
      %v467 = vsel %vm401, %v455, 0.0
      %v468 = vsel %vm402, %v454, 0.0
      %v469 = vsel %vm403, %v461, 0.0
      %v470 = vld [vmem:[%s1] sm:$0x3]
      %v471 = vunpack.c.l.bf16 %v470
      %473 = vset.pattern.permute.xlu0 0
      %474 = vperm.xlu0 %473, %v437
      %v475 = vpop.permute.xlu0 %474
      %478 = vset.pattern.permute.xlu0 0
      %479 = vperm.xlu0 %478, %v438
      %v480 = vpop.permute.xlu0 %479
      %483 = vset.pattern.permute.xlu0 0
      %484 = vperm.xlu0 %483, %v439
      %v485 = vpop.permute.xlu0 %484
      %488 = vset.pattern.permute.xlu0 0
      %489 = vperm.xlu0 %488, %v440
      %v490 = vpop.permute.xlu0 %489
      %493 = vset.pattern.permute.xlu0 0
      %494 = vperm.xlu0 %493, %v441
      %v495 = vpop.permute.xlu0 %494
      %498 = vset.pattern.permute.xlu0 0
      %499 = vperm.xlu0 %498, %v442
      %v500 = vpop.permute.xlu0 %499
      %503 = vset.pattern.permute.xlu0 0
      %504 = vperm.xlu0 %503, %v443
      %v505 = vpop.permute.xlu0 %504
      %508 = vset.pattern.permute.xlu0 0
      %509 = vperm.xlu0 %508, %v444
      %v510 = vpop.permute.xlu0 %509
      %v512 = vlaneseq
      %v513 = vshrl.u32 %v512, 7
      %v514 = vsub.s32 0, %v513
      %v515 = vrot.slane %v471, %v514
      %v516 = vmul.f32 %v475, %v515
      %v517 = vmul.f32 %v480, %v515
      %v518 = vmul.f32 %v485, %v515
      %v519 = vmul.f32 %v490, %v515
      %v520 = vmul.f32 %v495, %v515
      %v521 = vmul.f32 %v500, %v515
      %v522 = vmul.f32 %v505, %v515
      %v523 = vmul.f32 %v510, %v515
      %v524 = vadd.f32 %v516, 0.0
      %v525 = vadd.f32 %v517, 0.0
      %v526 = vadd.f32 %v518, 0.0
      %v527 = vadd.f32 %v519, 0.0
      %v528 = vadd.f32 %v520, 0.0
      %v529 = vadd.f32 %v521, 0.0
      %v530 = vadd.f32 %v522, 0.0
      %v531 = vadd.f32 %v523, 0.0
      %533 = vset.pattern.permute.xlu0 0
      %534 = vperm.xlu0 %533, %v412
      %v535 = vpop.permute.xlu0 %534
      %538 = vset.pattern.permute.xlu0 0
      %539 = vperm.xlu0 %538, %v413
      %v540 = vpop.permute.xlu0 %539
      %543 = vset.pattern.permute.xlu0 0
      %544 = vperm.xlu0 %543, %v414
      %v545 = vpop.permute.xlu0 %544
      %548 = vset.pattern.permute.xlu0 0
      %549 = vperm.xlu0 %548, %v415
      %v550 = vpop.permute.xlu0 %549
      %553 = vset.pattern.permute.xlu0 0
      %554 = vperm.xlu0 %553, %v416
      %v555 = vpop.permute.xlu0 %554
      %558 = vset.pattern.permute.xlu0 0
      %559 = vperm.xlu0 %558, %v417
      %v560 = vpop.permute.xlu0 %559
      %563 = vset.pattern.permute.xlu0 0
      %564 = vperm.xlu0 %563, %v418
      %v565 = vpop.permute.xlu0 %564
      %568 = vset.pattern.permute.xlu0 0
      %569 = vperm.xlu0 %568, %v419
      %v570 = vpop.permute.xlu0 %569
      %v572 = vlaneseq
      %v573 = vshrl.u32 %v572, 7
      %v574 = vsub.s32 1, %v573
      %v575 = vrot.slane %v471, %v574
      %v576 = vmul.f32 %v535, %v575
      %v577 = vmul.f32 %v540, %v575
      %v578 = vmul.f32 %v545, %v575
      %v579 = vmul.f32 %v550, %v575
      %v580 = vmul.f32 %v555, %v575
      %v581 = vmul.f32 %v560, %v575
      %v582 = vmul.f32 %v565, %v575
      %v583 = vmul.f32 %v570, %v575
      %v584 = vadd.f32 %v524, %v576
      %v585 = vadd.f32 %v525, %v577
      %v586 = vadd.f32 %v526, %v578
      %v587 = vadd.f32 %v527, %v579
      %v588 = vadd.f32 %v528, %v580
      %v589 = vadd.f32 %v529, %v581
      %v590 = vadd.f32 %v530, %v582
      %v591 = vadd.f32 %v531, %v583
      %593 = vset.pattern.permute.xlu0 0
      %594 = vperm.xlu0 %593, %v462
      %v595 = vpop.permute.xlu0 %594
      %598 = vset.pattern.permute.xlu0 0
      %599 = vperm.xlu0 %598, %v463
      %v600 = vpop.permute.xlu0 %599
      %603 = vset.pattern.permute.xlu0 0
      %604 = vperm.xlu0 %603, %v464
      %v605 = vpop.permute.xlu0 %604
      %608 = vset.pattern.permute.xlu0 0
      %609 = vperm.xlu0 %608, %v465
      %v610 = vpop.permute.xlu0 %609
      %613 = vset.pattern.permute.xlu0 0
      %614 = vperm.xlu0 %613, %v466
      %v615 = vpop.permute.xlu0 %614
      %618 = vset.pattern.permute.xlu0 0
      %619 = vperm.xlu0 %618, %v467
      %v620 = vpop.permute.xlu0 %619
      %623 = vset.pattern.permute.xlu0 0
      %624 = vperm.xlu0 %623, %v468
      %v625 = vpop.permute.xlu0 %624
      %628 = vset.pattern.permute.xlu0 0
      %629 = vperm.xlu0 %628, %v469
      %v630 = vpop.permute.xlu0 %629
      %v632 = vlaneseq
      %v633 = vshrl.u32 %v632, 7
      %v634 = vsub.s32 2, %v633
      %v635 = vrot.slane %v471, %v634
      %v636 = vmul.f32 %v595, %v635
      %v637 = vmul.f32 %v600, %v635
      %v638 = vmul.f32 %v605, %v635
      %v639 = vmul.f32 %v610, %v635
      %v640 = vmul.f32 %v615, %v635
      %v641 = vmul.f32 %v620, %v635
      %v642 = vmul.f32 %v625, %v635
      %v643 = vmul.f32 %v630, %v635
      %v644 = vadd.f32 %v584, %v636
      %v645 = vadd.f32 %v585, %v637
      %v646 = vadd.f32 %v586, %v638
      %v647 = vadd.f32 %v587, %v639
      %v648 = vadd.f32 %v588, %v640
      %v649 = vadd.f32 %v589, %v641
      %v650 = vadd.f32 %v590, %v642
      %v651 = vadd.f32 %v591, %v643
      %v652 = vld [vmem:[%s2] sm:$0x1]
      %v654 = vlaneseq
      %v655 = vshrl.u32 %v654, 7
      %v656 = vsub.s32 0, %v655
      %v657 = vrot.slane %v652, %v656
      %v659 = vmul.f32 %v644, %v657
      %v660 = vmul.f32 %v645, %v657
      %v661 = vmul.f32 %v646, %v657
      %v662 = vmul.f32 %v647, %v657
      %v663 = vmul.f32 %v648, %v657
      %v664 = vmul.f32 %v649, %v657
      %v665 = vmul.f32 %v650, %v657
      %v666 = vmul.f32 %v651, %v657
      %v667 = vld [vmem:[%s3] sm:$0x1]
      %v669 = vlaneseq
      %v670 = vshrl.u32 %v669, 7
      %v671 = vsub.s32 0, %v670
      %v672 = vrot.slane %v667, %v671
      %v674 = vadd.f32 %v659, %v672
      %v675 = vadd.f32 %v660, %v672
      %v676 = vadd.f32 %v661, %v672
      %v677 = vadd.f32 %v662, %v672
      %v678 = vadd.f32 %v663, %v672
      %v679 = vadd.f32 %v664, %v672
      %v680 = vadd.f32 %v665, %v672
      %v681 = vadd.f32 %v666, %v672
      %v682 = vmax.f32 %v674, 0.0
      %v683 = vmax.f32 %v675, 0.0
      %v684 = vmax.f32 %v676, 0.0
      %v685 = vmax.f32 %v677, 0.0
      %v686 = vmax.f32 %v678, 0.0
      %v687 = vmax.f32 %v679, 0.0
      %v688 = vmax.f32 %v680, 0.0
      %v689 = vmax.f32 %v681, 0.0
      %v690 = vrot.slane %v682, 7
      %v691 = vrot.slane %v683, 7
      %v692 = vrot.slane %v684, 7
      %v693 = vrot.slane %v685, 7
      %v694 = vrot.slane %v686, 7
      %v695 = vrot.slane %v687, 7
      %v696 = vrot.slane %v688, 7
      %v697 = vrot.slane %v689, 7
      %v698 = vsel %vm428, %v696, %v697
      %v699 = vsel %vm428, %v695, %v696
      %v700 = vsel %vm428, %v694, %v695
      %v701 = vsel %vm428, %v693, %v694
      %v702 = vsel %vm428, %v692, %v693
      %v703 = vsel %vm428, %v691, %v692
      %v704 = vsel %vm428, %v690, %v691
      %v705 = vsel %vm428, %v697, %v690
      %v706 = vsel %vm388, 1, 0
      %v707 = vsel %vm389, 1, 0
      %v708 = vsel %vm390, 1, 0
      %v709 = vsel %vm391, 1, 0
      %v710 = vsel %vm392, 1, 0
      %v711 = vsel %vm393, 1, 0
      %v712 = vsel %vm394, 1, 0
      %v713 = vsel %vm395, 1, 0
      %vm714 = vcmp.eq.s32.totalorder %v706, 1
      %vm715 = vcmp.eq.s32.totalorder %v707, 1
      %vm716 = vcmp.eq.s32.totalorder %v708, 1
      %vm717 = vcmp.eq.s32.totalorder %v709, 1
      %vm718 = vcmp.eq.s32.totalorder %v710, 1
      %vm719 = vcmp.eq.s32.totalorder %v711, 1
      %vm720 = vcmp.eq.s32.totalorder %v712, 1
      %vm721 = vcmp.eq.s32.totalorder %v713, 1
      %v722 = vsel %vm714, %v705, 0.0
      %v723 = vsel %vm715, %v704, 0.0
      %v724 = vsel %vm716, %v703, 0.0
      %v725 = vsel %vm717, %v702, 0.0
      %v726 = vsel %vm718, %v701, 0.0
      %v727 = vsel %vm719, %v700, 0.0
      %v728 = vsel %vm720, %v699, 0.0
      %v729 = vsel %vm721, %v698, 0.0
      %v730 = vrot.slane %v682, 1
      %v731 = vrot.slane %v683, 1
      %v732 = vrot.slane %v684, 1
      %v733 = vrot.slane %v685, 1
      %v734 = vrot.slane %v686, 1
      %v735 = vrot.slane %v687, 1
      %v736 = vrot.slane %v688, 1
      %v737 = vrot.slane %v689, 1
      %v738 = vsel %vm453, %v736, %v737
      %v739 = vsel %vm453, %v735, %v736
      %v740 = vsel %vm453, %v734, %v735
      %v741 = vsel %vm453, %v733, %v734
      %v742 = vsel %vm453, %v732, %v733
      %v743 = vsel %vm453, %v731, %v732
      %v744 = vsel %vm453, %v730, %v731
      %v745 = vsel %vm453, %v737, %v730
      %v746 = vsel %vm396, 1, 0
      %v747 = vsel %vm397, 1, 0
      %v748 = vsel %vm398, 1, 0
      %v749 = vsel %vm399, 1, 0
      %v750 = vsel %vm400, 1, 0
      %v751 = vsel %vm401, 1, 0
      %v752 = vsel %vm402, 1, 0
      %v753 = vsel %vm403, 1, 0
      %vm754 = vcmp.eq.s32.totalorder %v746, 1
      %vm755 = vcmp.eq.s32.totalorder %v747, 1
      %vm756 = vcmp.eq.s32.totalorder %v748, 1
      %vm757 = vcmp.eq.s32.totalorder %v749, 1
      %vm758 = vcmp.eq.s32.totalorder %v750, 1
      %vm759 = vcmp.eq.s32.totalorder %v751, 1
      %vm760 = vcmp.eq.s32.totalorder %v752, 1
      %vm761 = vcmp.eq.s32.totalorder %v753, 1
      %v762 = vsel %vm754, %v744, 0.0
      %v763 = vsel %vm755, %v743, 0.0
      %v764 = vsel %vm756, %v742, 0.0
      %v765 = vsel %vm757, %v741, 0.0
      %v766 = vsel %vm758, %v740, 0.0
      %v767 = vsel %vm759, %v739, 0.0
      %v768 = vsel %vm760, %v738, 0.0
      %v769 = vsel %vm761, %v745, 0.0
      %778 = vrot.lane.b32.xlu0 %v682, 32
      %v779 = vpop.permute.xlu0 %778
      %780 = vrot.lane.b32.xlu0 %v683, 32
      %v781 = vpop.permute.xlu0 %780
      %782 = vrot.lane.b32.xlu0 %v684, 32
      %v783 = vpop.permute.xlu0 %782
      %784 = vrot.lane.b32.xlu0 %v685, 32
      %v785 = vpop.permute.xlu0 %784
      %786 = vrot.lane.b32.xlu0 %v686, 32
      %v787 = vpop.permute.xlu0 %786
      %788 = vrot.lane.b32.xlu0 %v687, 32
      %v789 = vpop.permute.xlu0 %788
      %790 = vrot.lane.b32.xlu0 %v688, 32
      %v791 = vpop.permute.xlu0 %790
      %792 = vrot.lane.b32.xlu0 %v689, 32
      %v793 = vpop.permute.xlu0 %792
      %810 = vrot.lane.b32.xlu0 %v762, 64
      %v811 = vpop.permute.xlu0 %810
      %812 = vrot.lane.b32.xlu0 %v763, 64
      %v813 = vpop.permute.xlu0 %812
      %814 = vrot.lane.b32.xlu0 %v764, 64
      %v815 = vpop.permute.xlu0 %814
      %816 = vrot.lane.b32.xlu0 %v765, 64
      %v817 = vpop.permute.xlu0 %816
      %818 = vrot.lane.b32.xlu0 %v766, 64
      %v819 = vpop.permute.xlu0 %818
      %820 = vrot.lane.b32.xlu0 %v767, 64
      %v821 = vpop.permute.xlu0 %820
      %822 = vrot.lane.b32.xlu0 %v768, 64
      %v823 = vpop.permute.xlu0 %822
      %824 = vrot.lane.b32.xlu0 %v769, 64
      %v825 = vpop.permute.xlu0 %824
      %vm834 = vcmask 261120
      %v835 = vsel %vm834, %v722, %v779
      %v836 = vsel %vm834, %v723, %v781
      %v837 = vsel %vm834, %v724, %v783
      %v838 = vsel %vm834, %v725, %v785
      %v839 = vsel %vm834, %v726, %v787
      %v840 = vsel %vm834, %v727, %v789
      %v841 = vsel %vm834, %v728, %v791
      %v842 = vsel %vm834, %v729, %v793
      %vm843 = vcmask 523264
      %v844 = vsel %vm843, %v835, %v811
      %v845 = vsel %vm843, %v836, %v813
      %v846 = vsel %vm843, %v837, %v815
      %v847 = vsel %vm843, %v838, %v817
      %v848 = vsel %vm843, %v839, %v819
      %v849 = vsel %vm843, %v840, %v821
      %v850 = vsel %vm843, %v841, %v823
      %v851 = vsel %vm843, %v842, %v825
      %v852 = vpack.c.bf16 %v845, %v844
      %v853 = vpack.c.bf16 %v847, %v846
      %v854 = vpack.c.bf16 %v849, %v848
      %v855 = vpack.c.bf16 %v851, %v850
      %v856 = vld [vmem:[%s4] sm:$0xf]
      %v857 = vld [vmem:[%s4 + $0x4] sm:$0xf]
      %v858 = vld [vmem:[%s4 + $0x8] sm:$0xf]
      %v859 = vld [vmem:[%s4 + $0xc] sm:$0xf]
      %v860 = vld [vmem:[%s4 + $0x10] sm:$0xf]
      %v861 = vld [vmem:[%s4 + $0x14] sm:$0xf]
      %v862 = vld [vmem:[%s4 + $0x18] sm:$0xf]
      %v863 = vld [vmem:[%s4 + $0x1c] sm:$0xf]
      %v864 = vld [vmem:[%s4 + $0x20] sm:$0xf]
      %v865 = vld [vmem:[%s4 + $0x24] sm:$0xf]
      %v866 = vld [vmem:[%s4 + $0x28] sm:$0xf]
      %v867 = vld [vmem:[%s4 + $0x2c] sm:$0xf]
      %v880 = vunpack.c.l.b16 %v856
      %v881 = vunpack.c.l.b16 %v857
      %v882 = vunpack.c.l.b16 %v858
      %v883 = vunpack.c.l.b16 %v859
      %v884 = vunpack.c.l.b16 %v860
      %v885 = vunpack.c.l.b16 %v861
      %v886 = vunpack.c.l.b16 %v862
      %v887 = vunpack.c.l.b16 %v863
      %v888 = vunpack.c.l.b16 %v864
      %v889 = vunpack.c.l.b16 %v865
      %v890 = vunpack.c.l.b16 %v866
      %v891 = vunpack.c.l.b16 %v867
      %v892 = vpack.c.b16 %v881, %v880
      %v893 = vpack.c.b16 %v883, %v882
      %v894 = vpack.c.b16 %v885, %v884
      %v895 = vpack.c.b16 %v887, %v886
      %v896 = vpack.c.b16 %v889, %v888
      %v897 = vpack.c.b16 %v891, %v890
      %vm904 = vcmask 785408
      %v906 = vsel %vm904, %v852, 0
      %v909 = vsel %vm904, %v853, 0
      %v912 = vsel %vm904, %v854, 0
      %v915 = vsel %vm904, %v855, 0
      %917 = vmatprep.subr.bf16.mxu0 0
      %918 = vmatpush1.bf16.msra.mxu0 %v892
      %919 = vmatprep.subr.bf16.mxu0 0
      %920 = vmatpush1.bf16.msra.mxu0 %v893
      %921 = vmatprep.subr.bf16.mxu0 0
      %922 = vmatpush1.bf16.msra.mxu0 %v894
      %923 = vmatprep.subr.bf16.mxu0 0
      %924 = vmatpush1.bf16.msra.mxu0 %v895
      %925 = vmatprep.subr.bf16.mxu0 0
      %926 = vmatpush1.bf16.msra.mxu0 %v896
      %927 = vmatprep.subr.bf16.mxu0 0
      %928 = vmatpush1.bf16.msra.mxu0 %v897
      %929 = vmatprep.subr.bf16.mxu0 0
      %930 = vmatpush1.bf16.msra.mxu0 0
      %931 = vmatprep.subr.bf16.mxu0 0
      %932 = vmatpush1.bf16.msra.mxu0 0
      %933 = vmatprep.subr.bf16.mxu0 0
      %934 = vmatpush1.bf16.msra.mxu0 0
      %935 = vmatprep.subr.bf16.mxu0 0
      %936 = vmatpush1.bf16.msra.mxu0 0
      %937 = vmatprep.subr.bf16.mxu0 0
      %938 = vmatpush1.bf16.msra.mxu0 0
      %939 = vmatprep.subr.bf16.mxu0 0
      %940 = vmatpush1.bf16.msra.mxu0 0
      %941 = vmatprep.subr.bf16.mxu0 0
      %942 = vmatpush1.bf16.msra.mxu0 0
      %943 = vmatprep.subr.bf16.mxu0 0
      %944 = vmatpush1.bf16.msra.mxu0 0
      %945 = vmatprep.subr.bf16.mxu0 0
      %946 = vmatpush1.bf16.msra.mxu0 0
      %947 = vmatprep.subr.bf16.mxu0 0
      %948 = vmatpush1.bf16.msra.mxu0 0
      %949 = vmatprep.mubr.bf16.mxu0 0
      %950 = vmatmul.mubr.bf16.gmra.mrb[0].mxu0 %v906
      %v951 = vpop.f32.mrb[0].mxu0
      %v952 = vadd.f32 0.0, %v951
      %v953 = vpop.f32.mrb[0].mxu0
      %v954 = vpop.f32.mrb[0].mxu0
      %v955 = vadd.f32 0.0, %v954
      %v956 = vpop.f32.mrb[0].mxu0
      %957 = vmatprep.mubr.bf16.mxu0 0
      %958 = vmatmul.mubr.bf16.gmra.mrb[0].mxu0 %v909
      %v959 = vpop.f32.mrb[0].mxu0
      %v960 = vadd.f32 0.0, %v959
      %v961 = vpop.f32.mrb[0].mxu0
      %v962 = vpop.f32.mrb[0].mxu0
      %v963 = vadd.f32 0.0, %v962
      %v964 = vpop.f32.mrb[0].mxu0
      %965 = vmatprep.mubr.bf16.mxu0 0
      %966 = vmatmul.mubr.bf16.gmra.mrb[0].mxu0 %v912
      %v967 = vpop.f32.mrb[0].mxu0
      %v968 = vadd.f32 0.0, %v967
      %v969 = vpop.f32.mrb[0].mxu0
      %v970 = vpop.f32.mrb[0].mxu0
      %v971 = vadd.f32 0.0, %v970
      %v972 = vpop.f32.mrb[0].mxu0
      %973 = vmatprep.mubr.bf16.mxu0 0
      %974 = vmatmul.mubr.bf16.gmra.mrb[0].mxu0 %v915
      %v975 = vpop.f32.mrb[0].mxu0
      %v976 = vadd.f32 0.0, %v975
      %v977 = vpop.f32.mrb[0].mxu0
      %v978 = vpop.f32.mrb[0].mxu0
      %v979 = vadd.f32 0.0, %v978
      %v980 = vpop.f32.mrb[0].mxu0
      %981 = vdwg.mxu0
      %v982 = vld [vmem:[%s5] sm:$0x1]
      %v984 = vlaneseq
      %v985 = vshrl.u32 %v984, 7
      %v986 = vsub.s32 0, %v985
      %v987 = vrot.slane %v982, %v986
      %v989 = vmul.f32 %v952, %v987
      %v990 = vmul.f32 %v955, %v987
      %v991 = vmul.f32 %v960, %v987
      %v992 = vmul.f32 %v963, %v987
      %v993 = vmul.f32 %v968, %v987
      %v994 = vmul.f32 %v971, %v987
      %v995 = vmul.f32 %v976, %v987
      %v996 = vmul.f32 %v979, %v987
      %v997 = vld [vmem:[%s6] sm:$0x1]
      %v999 = vlaneseq
      %v1000 = vshrl.u32 %v999, 7
      %v1001 = vsub.s32 0, %v1000
      %v1002 = vrot.slane %v997, %v1001
      %v1004 = vadd.f32 %v989, %v1002
      %v1005 = vadd.f32 %v990, %v1002
      %v1006 = vadd.f32 %v991, %v1002
      %v1007 = vadd.f32 %v992, %v1002
      %v1008 = vadd.f32 %v993, %v1002
      %v1009 = vadd.f32 %v994, %v1002
      %v1010 = vadd.f32 %v995, %v1002
      %v1011 = vadd.f32 %v996, %v1002
      %v1012 = vmax.f32 %v1004, 0.0
      %v1013 = vmax.f32 %v1005, 0.0
      %v1014 = vmax.f32 %v1006, 0.0
      %v1015 = vmax.f32 %v1007, 0.0
      %v1016 = vmax.f32 %v1008, 0.0
      %v1017 = vmax.f32 %v1009, 0.0
      %v1018 = vmax.f32 %v1010, 0.0
      %v1019 = vmax.f32 %v1011, 0.0
      %1020 = vst.msk [vmem:[%s280] sm:$0xff] %vm834, %v1012
      %1021 = vst.msk [vmem:[%s280 + $0x8] sm:$0xff] %vm834, %v1013
      %1022 = vst.msk [vmem:[%s280 + $0x10] sm:$0xff] %vm834, %v1014
      %1023 = vst.msk [vmem:[%s280 + $0x18] sm:$0xff] %vm834, %v1015
      %1024 = vst.msk [vmem:[%s280 + $0x20] sm:$0xff] %vm834, %v1016
      %1025 = vst.msk [vmem:[%s280 + $0x28] sm:$0xff] %vm834, %v1017
      %1026 = vst.msk [vmem:[%s280 + $0x30] sm:$0xff] %vm834, %v1018
      %1027 = vst.msk [vmem:[%s280 + $0x38] sm:$0xff] %vm834, %v1019
      %s1028 = smul.u32 8, %s18
      %p1029 = scmp.lt.s32.totalorder %s1028, 15
      %s1030 = scalar_select %p1029, %s1028, 15
      %s1031 = smul.addr %s1030, 8
      %s1032 = scalar_lea.vmem %s7, %s1031
      // Predicated region
      $region49: #{conv_block_pallas.1} parent=47 // pred_check
        %p1033 = pneg %p188
      $region50: #{conv_block_pallas.1} parent=47 // pred_check_branch
        %1035 = sbr.rel (%p1033) target = $region52
      $region51: #{conv_block_pallas.1} parent=47 // pred_region
        %s1036 = smul.u32 8, %s18
      $region52: #{conv_block_pallas.1} parent=47 // pred_fallthru
        _
    $region48: #{conv_block_pallas.1} parent=5 // pred_fallthru
      _
    %p1037 = scmp.le.s32.totalorder 2, %s13
    // Predicated region
    $region53: #{conv_block_pallas.1} parent=5 // pred_check
      %p1038 = pneg %p1037
    $region54: #{conv_block_pallas.1} parent=5 // pred_check_branch
      %1040 = sbr.rel (%p1038) target = $region56
    $region55: #{conv_block_pallas.1} parent=5 // pred_region
      %s1041 = ssub.s32 %s13, 2
      // Predicated region
      $region57: #{conv_block_pallas.1} parent=55 // pred_check
        %p1042 = pneg %p194
      $region58: #{conv_block_pallas.1} parent=55 // pred_check_branch
        %1044 = sbr.rel (%p1042) target = $region60
      $region59: #{conv_block_pallas.1} parent=55 // pred_region
        %s1045 = smul.u32 8, %s19
        %p1046 = scmp.lt.s32.totalorder %s1045, 15
        %s1047 = scalar_select %p1046, %s1045, 15
        %s1048 = smul.addr %s1047, 8
        %s1049 = scalar_lea.vmem %s7, %s1048
      $region60: #{conv_block_pallas.1} parent=55 // pred_fallthru
        _
    $region56: #{conv_block_pallas.1} parent=5 // pred_fallthru
      _
  $region6: #{conv_block_pallas.1} parent=0 // loop_footer
    %s17 = sadd.s32 1, %s13
  $region7: #{conv_block_pallas.1} parent=0 // loop_footer_branch
    %12 = sbr.rel target = $region3
  $region8: #{conv_block_pallas.1} parent=0 // loop_exit
    _

</llo_original>
